<compile_context>
chip_gen: v6e
topology: v6e:2x2x1
jax: 0.10.0
libtpu: 0.0.40
codegen_flags: <defaults>
</compile_context>

<pallas_src>
import functools
import math

import jax
import jax.numpy as jnp
from jax.experimental import pallas as pl
from jax.experimental.pallas import tpu as pltpu


def _shifted_softplus_kernel(shift, x_ref, o_ref):
    # x_ref / o_ref: (TN, D) blocks in the caller's dtype.
    x = x_ref[...].astype(jnp.float32)
    # Numerically stable softplus: max(x, 0) + log1p(exp(-|x|)).
    sp = jnp.maximum(x, 0.0) + jnp.log1p(jnp.exp(-jnp.abs(x)))
    o_ref[...] = (sp - shift).astype(o_ref.dtype)


def shifted_softplus(x, *, target_block_bytes=2 * 1024 * 1024):
    """Elementwise softplus(x) - log(2), preserving the input dtype."""
    orig_shape = x.shape
    orig_dtype = x.dtype
    total = 1
    for s in orig_shape:
        total *= s

    # ---- Present a lane-dense (last dim multiple of 128) 2-D view. ----
    pad = 0
    if x.ndim >= 2 and orig_shape[-1] >= 128 and orig_shape[-1] % 128 == 0:
        d = orig_shape[-1]
        x2 = x.reshape(-1, d)
    else:
        flat = x.reshape(-1)
        d = None
        for cand in (512, 256, 128):
            if total % cand == 0:
                d = cand
                break
        if d is None:
            # Unavoidable pad (elementwise, so pure layout plumbing).
            d = 128
            pad = (-total) % d
            flat = jnp.pad(flat, (0, pad))
        x2 = flat.reshape(-1, d)

    n = x2.shape[0]

    # ---- Block sizing: ~2 MiB per block (f32 accounting) keeps 2 bufs of
    # input + 2 bufs of output inside v5e's 16 MiB scoped-VMEM default. ----
    rows_per_block = max(8, target_block_bytes // (d * 4))
    tn = max(8, (rows_per_block // 8) * 8)
    tn = min(tn, ((n + 7) // 8) * 8)
    grid = (pl.cdiv(n, tn),)

    itemsize = jnp.dtype(orig_dtype).itemsize
    cost = pl.CostEstimate(
        flops=3 * n * d,
        transcendentals=2 * n * d,
        bytes_accessed=2 * n * d * itemsize,
    )

    out = pl.pallas_call(
        functools.partial(_shifted_softplus_kernel, float(math.log(2.0))),
        out_shape=jax.ShapeDtypeStruct((n, d), orig_dtype),
        grid=grid,
        in_specs=[pl.BlockSpec((tn, d), lambda i: (i, 0))],
        out_specs=pl.BlockSpec((tn, d), lambda i: (i, 0)),
        compiler_params=pltpu.CompilerParams(
            dimension_semantics=("parallel",),  # shards rows across TCs on v7x
        ),
        cost_estimate=cost,
    )(x2)

    if pad:
        out = out.reshape(-1)[:total]
    return out.reshape(orig_shape)


def shifted_softplus_ref(x):
    # pure-JAX reference mirroring the PyTorch forward
    return jax.nn.softplus(x.astype(jnp.float32)).astype(x.dtype) - jnp.asarray(
        math.log(2.0), dtype=x.dtype
    )


if __name__ == "__main__":
    key = jax.random.PRNGKey(0)
    k0, k1, k2 = jax.random.split(key, 3)

    # 1) EGNN-encoder-like hidden features: lane-dense hidden=128, N not
    #    tile-aligned (exercises the ragged last block).
    x_f32 = jax.random.normal(k0, (200, 128), dtype=jnp.float32) * 5.0
    out_f32 = jax.block_until_ready(shifted_softplus(x_f32))
    assert out_f32.shape == x_f32.shape and out_f32.dtype == jnp.float32
    assert jnp.allclose(out_f32, shifted_softplus_ref(x_f32), atol=1e-6, rtol=1e-6)

    # 2) Non-lane-aligned trailing dim -> exercises the lane-dense repack path.
    x_small = jax.random.normal(k1, (2, 4, 16, 16), dtype=jnp.float32) * 3.0
    out_small = jax.block_until_ready(shifted_softplus(x_small))
    assert out_small.shape == x_small.shape
    assert jnp.allclose(out_small, shifted_softplus_ref(x_small), atol=1e-6, rtol=1e-6)

    # 3) bf16 input -> dtype preserved, cast done in-kernel (no extra HBM pass).
    x_bf16 = (jax.random.normal(k2, (64, 128), dtype=jnp.float32) * 4.0).astype(
        jnp.bfloat16
    )
    out_bf16 = jax.block_until_ready(shifted_softplus(x_bf16))
    assert out_bf16.shape == x_bf16.shape and out_bf16.dtype == jnp.bfloat16
    assert jnp.allclose(
        out_bf16.astype(jnp.float32),
        shifted_softplus_ref(x_bf16).astype(jnp.float32),
        atol=2e-2,
        rtol=2e-2,
    )

    print("KERNEL_OK")
</pallas_src>

<mosaic_0001>
module attributes {stable_mosaic.version = 11 : i64} {
  func.func @_shifted_softplus_kernel(%arg0: i32, %arg1: memref<200x128xf32, #tpu.memory_space<vmem>>, %arg2: memref<200x128xf32, #tpu.memory_space<vmem>>) attributes {dimension_semantics = [#tpu.dimension_semantics<parallel>], iteration_bounds = array<i64: 1>, scalar_prefetch = 0 : i64, scratch_operands = 0 : i64, tpu.core_type = #tpu.core_type<tc>, window_params = [{transform_indices = @transform_0, window_bounds = array<i64: 200, 128>}, {transform_indices = @transform_1, window_bounds = array<i64: 200, 128>}]} {
    %c0 = arith.constant 0 : index
    %c0_0 = arith.constant 0 : index
    %0 = vector.load %arg1[%c0, %c0_0] : memref<200x128xf32, #tpu.memory_space<vmem>>, vector<200x128xf32>
    %cst = arith.constant 0.000000e+00 : f32
    %1 = vector.broadcast %cst : f32 to vector<200x128xf32>
    %2 = arith.maximumf %0, %1 : vector<200x128xf32>
    %3 = math.absf %0 : vector<200x128xf32>
    %cst_1 = arith.constant 0.000000e+00 : f32
    %4 = vector.broadcast %cst_1 : f32 to vector<200x128xf32>
    %5 = arith.subf %4, %3 : vector<200x128xf32>
    %6 = math.exp %5 : vector<200x128xf32>
    %7 = math.log1p %6 : vector<200x128xf32>
    %8 = arith.addf %2, %7 : vector<200x128xf32>
    %cst_2 = arith.constant 0.693147182 : f32
    %9 = vector.broadcast %cst_2 : f32 to vector<200x128xf32>
    %10 = arith.subf %8, %9 : vector<200x128xf32>
    %c0_3 = arith.constant 0 : index
    %c0_4 = arith.constant 0 : index
    %11 = vector.load %arg2[%c0_3, %c0_4] : memref<200x128xf32, #tpu.memory_space<vmem>>, vector<200x128xf32>
    tpu.vector_store %arg2[%c0_3, %c0_4], %10 {strides = array<i32>} : memref<200x128xf32, #tpu.memory_space<vmem>>, vector<200x128xf32>,
    return
  }
  func.func @transform_0(%arg0: i32) -> (i32, i32) {
    %c0_i32 = arith.constant 0 : i32
    %c0_i32_0 = arith.constant 0 : i32
    return %arg0, %c0_i32 : i32, i32
  }
  func.func @transform_1(%arg0: i32) -> (i32, i32) {
    %c0_i32 = arith.constant 0 : i32
    %c0_i32_0 = arith.constant 0 : i32
    return %arg0, %c0_i32 : i32, i32
  }
}

</mosaic_0001>

<llo_original>
// kernel: tpu_custom_call.1
$region0: #{tpu_custom_call.1}
  #allocation0 [shape = 'u32[]', space=smem, size = 0x4, offset = 0x4, fixed_abs, tag = 'smem constant byte address 0x4 - core index']
  #allocation1 [shape = 'u32[144,128]{1,0:T(1,128)}', space=vmem, size = 0x12000, scoped, tag = 'internal scratch']
  %s0 = inlined_call_operand.hbm [shape: f32[200,128], index: 0, kind: input, shape index: {}]
  %s1 = inlined_call_operand.hbm [shape: f32[200,128], index: 1, kind: output, shape index: {}]
  %s2 = sld [smem:[#allocation0]]
  $region18: #{tpu_custom_call.1} parent=0
    _
  %s4 = ssub.s32 1, %s2
  %s5 = scalar_select 0, %s4, %s2
  $region1: #{tpu_custom_call.1} parent=0
    #allocation2 [shape = 'u8[102400]{0}', space=vmem, size = 0x19000, scoped, tag = 'input window, operand 0, single buffered']
    #allocation3 [shape = 's32[1]{0}', space=sflag, size = 0x4, scoped, tag = 'scoped memory for tpu_custom_call.1']
    #allocation4 [shape = 's32[1]{0}', space=sflag, size = 0x4, scoped, tag = 'scoped memory for tpu_custom_call.1']
    #allocation5 [shape = 'u8[102400]{0}', space=vmem, size = 0x19000, scoped, tag = 'output window, operand 0, single buffered']
    %6 = vsyncpa [#allocation3], 0
    %7 = vsyncpa [#allocation4], 0
    // Predicated region
    $region2: #{tpu_custom_call.1} parent=1 // pred_check
      _
    $region3: #{tpu_custom_call.1} parent=1 // pred_check_branch
      %9 = sbr.rel (0) target = $region5
    $region4: #{tpu_custom_call.1} parent=1 // pred_region
      %s11 = ssub.s32 3200, 3200
      %12 = vsyncadd [#allocation3], %s11
      %s13 = sshll.u32 [#allocation2], 4
      %s14 = int_to_ptr.vmem [resolvable:$true] %s13
      %19 = dma.hbm_to_vmem [thread:$0]  %s0, 3200, %s14, [#allocation3], 128, 128, 8
    $region5: #{tpu_custom_call.1} parent=1 // pred_fallthru
      _
    // Predicated region
    $region6: #{tpu_custom_call.1} parent=1 // pred_check
      _
    $region7: #{tpu_custom_call.1} parent=1 // pred_check_branch
      %21 = sbr.rel (0) target = $region9
    $region8: #{tpu_custom_call.1} parent=1 // pred_region
      %22 = dma.done [#allocation3], 3200
    $region9: #{tpu_custom_call.1} parent=1 // pred_fallthru
      _
    %v23 = vld [vmem:[#allocation2] sm:$0xff]
    %v24 = vld [vmem:[#allocation2 + $0x8] sm:$0xff]
    %v25 = vld [vmem:[#allocation2 + $0x10] sm:$0xff]
    %v26 = vld [vmem:[#allocation2 + $0x18] sm:$0xff]
    %v27 = vld [vmem:[#allocation2 + $0x20] sm:$0xff]
    %v28 = vld [vmem:[#allocation2 + $0x28] sm:$0xff]
    %v29 = vld [vmem:[#allocation2 + $0x30] sm:$0xff]
    %v30 = vld [vmem:[#allocation2 + $0x38] sm:$0xff]
    %v31 = vld [vmem:[#allocation2 + $0x40] sm:$0xff]
    %v32 = vld [vmem:[#allocation2 + $0x48] sm:$0xff]
    %v33 = vld [vmem:[#allocation2 + $0x50] sm:$0xff]
    %v34 = vld [vmem:[#allocation2 + $0x58] sm:$0xff]
    %v35 = vld [vmem:[#allocation2 + $0x60] sm:$0xff]
    %v36 = vld [vmem:[#allocation2 + $0x68] sm:$0xff]
    %v37 = vld [vmem:[#allocation2 + $0x70] sm:$0xff]
    %v38 = vld [vmem:[#allocation2 + $0x78] sm:$0xff]
    %v39 = vld [vmem:[#allocation2 + $0x80] sm:$0xff]
    %v40 = vld [vmem:[#allocation2 + $0x88] sm:$0xff]
    %v41 = vld [vmem:[#allocation2 + $0x90] sm:$0xff]
    %v42 = vld [vmem:[#allocation2 + $0x98] sm:$0xff]
    %v43 = vld [vmem:[#allocation2 + $0xa0] sm:$0xff]
    %v44 = vld [vmem:[#allocation2 + $0xa8] sm:$0xff]
    %v45 = vld [vmem:[#allocation2 + $0xb0] sm:$0xff]
    %v46 = vld [vmem:[#allocation2 + $0xb8] sm:$0xff]
    %v47 = vld [vmem:[#allocation2 + $0xc0] sm:$0xff]
    %v48 = vmax.f32 %v23, 0.0
    %v49 = vmax.f32 %v24, 0.0
    %v50 = vmax.f32 %v25, 0.0
    %v51 = vmax.f32 %v26, 0.0
    %v52 = vmax.f32 %v27, 0.0
    %v53 = vmax.f32 %v28, 0.0
    %v54 = vmax.f32 %v29, 0.0
    %v55 = vmax.f32 %v30, 0.0
    %v56 = vmax.f32 %v31, 0.0
    %v57 = vmax.f32 %v32, 0.0
    %v58 = vmax.f32 %v33, 0.0
    %v59 = vmax.f32 %v34, 0.0
    %v60 = vmax.f32 %v35, 0.0
    %v61 = vmax.f32 %v36, 0.0
    %v62 = vmax.f32 %v37, 0.0
    %v63 = vmax.f32 %v38, 0.0
    %v64 = vmax.f32 %v39, 0.0
    %v65 = vmax.f32 %v40, 0.0
    %v66 = vmax.f32 %v41, 0.0
    %v67 = vmax.f32 %v42, 0.0
    %v68 = vmax.f32 %v43, 0.0
    %v69 = vmax.f32 %v44, 0.0
    %v70 = vmax.f32 %v45, 0.0
    %v71 = vmax.f32 %v46, 0.0
    %v72 = vmax.f32 %v47, 0.0
    %v73 = vand.u32 2147483647, %v23
    %v74 = vand.u32 2147483647, %v24
    %v75 = vand.u32 2147483647, %v25
    %v76 = vand.u32 2147483647, %v26
    %v77 = vand.u32 2147483647, %v27
    %v78 = vand.u32 2147483647, %v28
    %v79 = vand.u32 2147483647, %v29
    %v80 = vand.u32 2147483647, %v30
    %v81 = vand.u32 2147483647, %v31
    %v82 = vand.u32 2147483647, %v32
    %v83 = vand.u32 2147483647, %v33
    %v84 = vand.u32 2147483647, %v34
    %v85 = vand.u32 2147483647, %v35
    %v86 = vand.u32 2147483647, %v36
    %v87 = vand.u32 2147483647, %v37
    %v88 = vand.u32 2147483647, %v38
    %v89 = vand.u32 2147483647, %v39
    %v90 = vand.u32 2147483647, %v40
    %v91 = vand.u32 2147483647, %v41
    %v92 = vand.u32 2147483647, %v42
    %v93 = vand.u32 2147483647, %v43
    %v94 = vand.u32 2147483647, %v44
    %v95 = vand.u32 2147483647, %v45
    %v96 = vand.u32 2147483647, %v46
    %v97 = vand.u32 2147483647, %v47
    %v98 = vsub.f32 0.0, %v73
    %v99 = vsub.f32 0.0, %v74
    %v100 = vsub.f32 0.0, %v75
    %v101 = vsub.f32 0.0, %v76
    %v102 = vsub.f32 0.0, %v77
    %v103 = vsub.f32 0.0, %v78
    %v104 = vsub.f32 0.0, %v79
    %v105 = vsub.f32 0.0, %v80
    %v106 = vsub.f32 0.0, %v81
    %v107 = vsub.f32 0.0, %v82
    %v108 = vsub.f32 0.0, %v83
    %v109 = vsub.f32 0.0, %v84
    %v110 = vsub.f32 0.0, %v85
    %v111 = vsub.f32 0.0, %v86
    %v112 = vsub.f32 0.0, %v87
    %v113 = vsub.f32 0.0, %v88
    %v114 = vsub.f32 0.0, %v89
    %v115 = vsub.f32 0.0, %v90
    %v116 = vsub.f32 0.0, %v91
    %v117 = vsub.f32 0.0, %v92
    %v118 = vsub.f32 0.0, %v93
    %v119 = vsub.f32 0.0, %v94
    %v120 = vsub.f32 0.0, %v95
    %v121 = vsub.f32 0.0, %v96
    %v122 = vsub.f32 0.0, %v97
    %v123 = vmul.f32 %v98, 1.442695
    %v124 = vpow.pop %v123
    %v125 = vmul.f32 %v99, 1.442695
    %v126 = vpow.pop %v125
    %v127 = vmul.f32 %v100, 1.442695
    %v128 = vpow.pop %v127
    %v129 = vmul.f32 %v101, 1.442695
    %v130 = vpow.pop %v129
    %v131 = vmul.f32 %v102, 1.442695
    %v132 = vpow.pop %v131
    %v133 = vmul.f32 %v103, 1.442695
    %v134 = vpow.pop %v133
    %v135 = vmul.f32 %v104, 1.442695
    %v136 = vpow.pop %v135
    %v137 = vmul.f32 %v105, 1.442695
    %v138 = vpow.pop %v137
    %v139 = vmul.f32 %v106, 1.442695
    %v140 = vpow.pop %v139
    %v141 = vmul.f32 %v107, 1.442695
    %v142 = vpow.pop %v141
    %v143 = vmul.f32 %v108, 1.442695
    %v144 = vpow.pop %v143
    %v145 = vmul.f32 %v109, 1.442695
    %v146 = vpow.pop %v145
    %v147 = vmul.f32 %v110, 1.442695
    %v148 = vpow.pop %v147
    %v149 = vmul.f32 %v111, 1.442695
    %v150 = vpow.pop %v149
    %v151 = vmul.f32 %v112, 1.442695
    %v152 = vpow.pop %v151
    %v153 = vmul.f32 %v113, 1.442695
    %v154 = vpow.pop %v153
    %v155 = vmul.f32 %v114, 1.442695
    %v156 = vpow.pop %v155
    %v157 = vmul.f32 %v115, 1.442695
    %v158 = vpow.pop %v157
    %v159 = vmul.f32 %v116, 1.442695
    %v160 = vpow.pop %v159
    %v161 = vmul.f32 %v117, 1.442695
    %v162 = vpow.pop %v161
    %v163 = vmul.f32 %v118, 1.442695
    %v164 = vpow.pop %v163
    %v165 = vmul.f32 %v119, 1.442695
    %v166 = vpow.pop %v165
    %v167 = vmul.f32 %v120, 1.442695
    %v168 = vpow.pop %v167
    %v169 = vmul.f32 %v121, 1.442695
    %v170 = vpow.pop %v169
    %v171 = vmul.f32 %v122, 1.442695
    %v172 = vpow.pop %v171
    %v173 = vadd.f32 %v124, 1.0
    %v174 = vlog2.pop %v173
    %v175 = vmul.f32 %v174, 0.6931472
    %v176 = vmul.f32 -0.5, %v124
    %v177 = vadd.f32 %v176, 1.0
    %v178 = vmul.f32 %v177, %v124
    %v179 = vand.u32 2147483647, %v124
    %vm180 = vcmp.lt.f32.partialorder %v179, 0.0004427343
    %v181 = vsel %vm180, %v178, %v175
    %v182 = vadd.f32 %v126, 1.0
    %v183 = vlog2.pop %v182
    %v184 = vmul.f32 %v183, 0.6931472
    %v185 = vmul.f32 -0.5, %v126
    %v186 = vadd.f32 %v185, 1.0
    %v187 = vmul.f32 %v186, %v126
    %v188 = vand.u32 2147483647, %v126
    %vm189 = vcmp.lt.f32.partialorder %v188, 0.0004427343
    %v190 = vsel %vm189, %v187, %v184
    %v191 = vadd.f32 %v128, 1.0
    %v192 = vlog2.pop %v191
    %v193 = vmul.f32 %v192, 0.6931472
    %v194 = vmul.f32 -0.5, %v128
    %v195 = vadd.f32 %v194, 1.0
    %v196 = vmul.f32 %v195, %v128
    %v197 = vand.u32 2147483647, %v128
    %vm198 = vcmp.lt.f32.partialorder %v197, 0.0004427343
    %v199 = vsel %vm198, %v196, %v193
    %v200 = vadd.f32 %v130, 1.0
    %v201 = vlog2.pop %v200
    %v202 = vmul.f32 %v201, 0.6931472
    %v203 = vmul.f32 -0.5, %v130
    %v204 = vadd.f32 %v203, 1.0
    %v205 = vmul.f32 %v204, %v130
    %v206 = vand.u32 2147483647, %v130
    %vm207 = vcmp.lt.f32.partialorder %v206, 0.0004427343
    %v208 = vsel %vm207, %v205, %v202
    %v209 = vadd.f32 %v132, 1.0
    %v210 = vlog2.pop %v209
    %v211 = vmul.f32 %v210, 0.6931472
    %v212 = vmul.f32 -0.5, %v132
    %v213 = vadd.f32 %v212, 1.0
    %v214 = vmul.f32 %v213, %v132
    %v215 = vand.u32 2147483647, %v132
    %vm216 = vcmp.lt.f32.partialorder %v215, 0.0004427343
    %v217 = vsel %vm216, %v214, %v211
    %v218 = vadd.f32 %v134, 1.0
    %v219 = vlog2.pop %v218
    %v220 = vmul.f32 %v219, 0.6931472
    %v221 = vmul.f32 -0.5, %v134
    %v222 = vadd.f32 %v221, 1.0
    %v223 = vmul.f32 %v222, %v134
    %v224 = vand.u32 2147483647, %v134
    %vm225 = vcmp.lt.f32.partialorder %v224, 0.0004427343
    %v226 = vsel %vm225, %v223, %v220
    %v227 = vadd.f32 %v136, 1.0
    %v228 = vlog2.pop %v227
    %v229 = vmul.f32 %v228, 0.6931472
    %v230 = vmul.f32 -0.5, %v136
    %v231 = vadd.f32 %v230, 1.0
    %v232 = vmul.f32 %v231, %v136
    %v233 = vand.u32 2147483647, %v136
    %vm234 = vcmp.lt.f32.partialorder %v233, 0.0004427343
    %v235 = vsel %vm234, %v232, %v229
    %v236 = vadd.f32 %v138, 1.0
    %v237 = vlog2.pop %v236
    %v238 = vmul.f32 %v237, 0.6931472
    %v239 = vmul.f32 -0.5, %v138
    %v240 = vadd.f32 %v239, 1.0
    %v241 = vmul.f32 %v240, %v138
    %v242 = vand.u32 2147483647, %v138
    %vm243 = vcmp.lt.f32.partialorder %v242, 0.0004427343
    %v244 = vsel %vm243, %v241, %v238
    %v245 = vadd.f32 %v140, 1.0
    %v246 = vlog2.pop %v245
    %v247 = vmul.f32 %v246, 0.6931472
    %v248 = vmul.f32 -0.5, %v140
    %v249 = vadd.f32 %v248, 1.0
    %v250 = vmul.f32 %v249, %v140
    %v251 = vand.u32 2147483647, %v140
    %vm252 = vcmp.lt.f32.partialorder %v251, 0.0004427343
    %v253 = vsel %vm252, %v250, %v247
    %v254 = vadd.f32 %v142, 1.0
    %v255 = vlog2.pop %v254
    %v256 = vmul.f32 %v255, 0.6931472
    %v257 = vmul.f32 -0.5, %v142
    %v258 = vadd.f32 %v257, 1.0
    %v259 = vmul.f32 %v258, %v142
    %v260 = vand.u32 2147483647, %v142
    %vm261 = vcmp.lt.f32.partialorder %v260, 0.0004427343
    %v262 = vsel %vm261, %v259, %v256
    %v263 = vadd.f32 %v144, 1.0
    %v264 = vlog2.pop %v263
    %v265 = vmul.f32 %v264, 0.6931472
    %v266 = vmul.f32 -0.5, %v144
    %v267 = vadd.f32 %v266, 1.0
    %v268 = vmul.f32 %v267, %v144
    %v269 = vand.u32 2147483647, %v144
    %vm270 = vcmp.lt.f32.partialorder %v269, 0.0004427343
    %v271 = vsel %vm270, %v268, %v265
    %v272 = vadd.f32 %v146, 1.0
    %v273 = vlog2.pop %v272
    %v274 = vmul.f32 %v273, 0.6931472
    %v275 = vmul.f32 -0.5, %v146
    %v276 = vadd.f32 %v275, 1.0
    %v277 = vmul.f32 %v276, %v146
    %v278 = vand.u32 2147483647, %v146
    %vm279 = vcmp.lt.f32.partialorder %v278, 0.0004427343
    %v280 = vsel %vm279, %v277, %v274
    %v281 = vadd.f32 %v148, 1.0
    %v282 = vlog2.pop %v281
    %v283 = vmul.f32 %v282, 0.6931472
    %v284 = vmul.f32 -0.5, %v148
    %v285 = vadd.f32 %v284, 1.0
    %v286 = vmul.f32 %v285, %v148
    %v287 = vand.u32 2147483647, %v148
    %vm288 = vcmp.lt.f32.partialorder %v287, 0.0004427343
    %v289 = vsel %vm288, %v286, %v283
    %v290 = vadd.f32 %v150, 1.0
    %v291 = vlog2.pop %v290
    %v292 = vmul.f32 %v291, 0.6931472
    %v293 = vmul.f32 -0.5, %v150
    %v294 = vadd.f32 %v293, 1.0
    %v295 = vmul.f32 %v294, %v150
    %v296 = vand.u32 2147483647, %v150
    %vm297 = vcmp.lt.f32.partialorder %v296, 0.0004427343
    %v298 = vsel %vm297, %v295, %v292
    %v299 = vadd.f32 %v152, 1.0
    %v300 = vlog2.pop %v299
    %v301 = vmul.f32 %v300, 0.6931472
    %v302 = vmul.f32 -0.5, %v152
    %v303 = vadd.f32 %v302, 1.0
    %v304 = vmul.f32 %v303, %v152
    %v305 = vand.u32 2147483647, %v152
    %vm306 = vcmp.lt.f32.partialorder %v305, 0.0004427343
    %v307 = vsel %vm306, %v304, %v301
    %v308 = vadd.f32 %v154, 1.0
    %v309 = vlog2.pop %v308
    %v310 = vmul.f32 %v309, 0.6931472
    %v311 = vmul.f32 -0.5, %v154
    %v312 = vadd.f32 %v311, 1.0
    %v313 = vmul.f32 %v312, %v154
    %v314 = vand.u32 2147483647, %v154
    %vm315 = vcmp.lt.f32.partialorder %v314, 0.0004427343
    %v316 = vsel %vm315, %v313, %v310
    %v317 = vadd.f32 %v156, 1.0
    %v318 = vlog2.pop %v317
    %v319 = vmul.f32 %v318, 0.6931472
    %v320 = vmul.f32 -0.5, %v156
    %v321 = vadd.f32 %v320, 1.0
    %v322 = vmul.f32 %v321, %v156
    %v323 = vand.u32 2147483647, %v156
    %vm324 = vcmp.lt.f32.partialorder %v323, 0.0004427343
    %v325 = vsel %vm324, %v322, %v319
    %v326 = vadd.f32 %v158, 1.0
    %v327 = vlog2.pop %v326
    %v328 = vmul.f32 %v327, 0.6931472
    %v329 = vmul.f32 -0.5, %v158
    %v330 = vadd.f32 %v329, 1.0
    %v331 = vmul.f32 %v330, %v158
    %v332 = vand.u32 2147483647, %v158
    %vm333 = vcmp.lt.f32.partialorder %v332, 0.0004427343
    %v334 = vsel %vm333, %v331, %v328
    %v335 = vadd.f32 %v160, 1.0
    %v336 = vlog2.pop %v335
    %v337 = vmul.f32 %v336, 0.6931472
    %v338 = vmul.f32 -0.5, %v160
    %v339 = vadd.f32 %v338, 1.0
    %v340 = vmul.f32 %v339, %v160
    %v341 = vand.u32 2147483647, %v160
    %vm342 = vcmp.lt.f32.partialorder %v341, 0.0004427343
    %v343 = vsel %vm342, %v340, %v337
    %v344 = vadd.f32 %v162, 1.0
    %v345 = vlog2.pop %v344
    %v346 = vmul.f32 %v345, 0.6931472
    %v347 = vmul.f32 -0.5, %v162
    %v348 = vadd.f32 %v347, 1.0
    %v349 = vmul.f32 %v348, %v162
    %v350 = vand.u32 2147483647, %v162
    %vm351 = vcmp.lt.f32.partialorder %v350, 0.0004427343
    %v352 = vsel %vm351, %v349, %v346
    %v353 = vadd.f32 %v164, 1.0
    %v354 = vlog2.pop %v353
    %v355 = vmul.f32 %v354, 0.6931472
    %v356 = vmul.f32 -0.5, %v164
    %v357 = vadd.f32 %v356, 1.0
    %v358 = vmul.f32 %v357, %v164
    %v359 = vand.u32 2147483647, %v164
    %vm360 = vcmp.lt.f32.partialorder %v359, 0.0004427343
    %v361 = vsel %vm360, %v358, %v355
    %v362 = vadd.f32 %v166, 1.0
    %v363 = vlog2.pop %v362
    %v364 = vmul.f32 %v363, 0.6931472
    %v365 = vmul.f32 -0.5, %v166
    %v366 = vadd.f32 %v365, 1.0
    %v367 = vmul.f32 %v366, %v166
    %v368 = vand.u32 2147483647, %v166
    %vm369 = vcmp.lt.f32.partialorder %v368, 0.0004427343
    %v370 = vsel %vm369, %v367, %v364
    %v371 = vadd.f32 %v168, 1.0
    %v372 = vlog2.pop %v371
    %v373 = vmul.f32 %v372, 0.6931472
    %v374 = vmul.f32 -0.5, %v168
    %v375 = vadd.f32 %v374, 1.0
    %v376 = vmul.f32 %v375, %v168
    %v377 = vand.u32 2147483647, %v168
    %vm378 = vcmp.lt.f32.partialorder %v377, 0.0004427343
    %v379 = vsel %vm378, %v376, %v373
    %v380 = vadd.f32 %v170, 1.0
    %v381 = vlog2.pop %v380
    %v382 = vmul.f32 %v381, 0.6931472
    %v383 = vmul.f32 -0.5, %v170
    %v384 = vadd.f32 %v383, 1.0
    %v385 = vmul.f32 %v384, %v170
    %v386 = vand.u32 2147483647, %v170
    %vm387 = vcmp.lt.f32.partialorder %v386, 0.0004427343
    %v388 = vsel %vm387, %v385, %v382
    %v389 = vadd.f32 %v172, 1.0
    %v390 = vlog2.pop %v389
    %v391 = vmul.f32 %v390, 0.6931472
    %v392 = vmul.f32 -0.5, %v172
    %v393 = vadd.f32 %v392, 1.0
    %v394 = vmul.f32 %v393, %v172
    %v395 = vand.u32 2147483647, %v172
    %vm396 = vcmp.lt.f32.partialorder %v395, 0.0004427343
    %v397 = vsel %vm396, %v394, %v391
    %v398 = vadd.f32 %v48, %v181
    %v399 = vadd.f32 %v49, %v190
    %v400 = vadd.f32 %v50, %v199
    %v401 = vadd.f32 %v51, %v208
    %v402 = vadd.f32 %v52, %v217
    %v403 = vadd.f32 %v53, %v226
    %v404 = vadd.f32 %v54, %v235
    %v405 = vadd.f32 %v55, %v244
    %v406 = vadd.f32 %v56, %v253
    %v407 = vadd.f32 %v57, %v262
    %v408 = vadd.f32 %v58, %v271
    %v409 = vadd.f32 %v59, %v280
    %v410 = vadd.f32 %v60, %v289
    %v411 = vadd.f32 %v61, %v298
    %v412 = vadd.f32 %v62, %v307
    %v413 = vadd.f32 %v63, %v316
    %v414 = vadd.f32 %v64, %v325
    %v415 = vadd.f32 %v65, %v334
    %v416 = vadd.f32 %v66, %v343
    %v417 = vadd.f32 %v67, %v352
    %v418 = vadd.f32 %v68, %v361
    %v419 = vadd.f32 %v69, %v370
    %v420 = vadd.f32 %v70, %v379
    %v421 = vadd.f32 %v71, %v388
    %v422 = vadd.f32 %v72, %v397
    %v423 = vsub.f32 %v398, 0.6931472
    %v424 = vsub.f32 %v399, 0.6931472
    %v425 = vsub.f32 %v400, 0.6931472
    %v426 = vsub.f32 %v401, 0.6931472
    %v427 = vsub.f32 %v402, 0.6931472
    %v428 = vsub.f32 %v403, 0.6931472
    %v429 = vsub.f32 %v404, 0.6931472
    %v430 = vsub.f32 %v405, 0.6931472
    %v431 = vsub.f32 %v406, 0.6931472
    %v432 = vsub.f32 %v407, 0.6931472
    %v433 = vsub.f32 %v408, 0.6931472
    %v434 = vsub.f32 %v409, 0.6931472
    %v435 = vsub.f32 %v410, 0.6931472
    %v436 = vsub.f32 %v411, 0.6931472
    %v437 = vsub.f32 %v412, 0.6931472
    %v438 = vsub.f32 %v413, 0.6931472
    %v439 = vsub.f32 %v414, 0.6931472
    %v440 = vsub.f32 %v415, 0.6931472
    %v441 = vsub.f32 %v416, 0.6931472
    %v442 = vsub.f32 %v417, 0.6931472
    %v443 = vsub.f32 %v418, 0.6931472
    %v444 = vsub.f32 %v419, 0.6931472
    %v445 = vsub.f32 %v420, 0.6931472
    %v446 = vsub.f32 %v421, 0.6931472
    %v447 = vsub.f32 %v422, 0.6931472
    %448 = vst [vmem:[#allocation5] sm:$0xff] %v423
    %449 = vst [vmem:[#allocation5 + $0x8] sm:$0xff] %v424
    %450 = vst [vmem:[#allocation5 + $0x10] sm:$0xff] %v425
    %451 = vst [vmem:[#allocation5 + $0x18] sm:$0xff] %v426
    %452 = vst [vmem:[#allocation5 + $0x20] sm:$0xff] %v427
    %453 = vst [vmem:[#allocation5 + $0x28] sm:$0xff] %v428
    %454 = vst [vmem:[#allocation5 + $0x30] sm:$0xff] %v429
    %455 = vst [vmem:[#allocation5 + $0x38] sm:$0xff] %v430
    %456 = vst [vmem:[#allocation5 + $0x40] sm:$0xff] %v431
    %457 = vst [vmem:[#allocation5 + $0x48] sm:$0xff] %v432
    %458 = vst [vmem:[#allocation5 + $0x50] sm:$0xff] %v433
    %459 = vst [vmem:[#allocation5 + $0x58] sm:$0xff] %v434
    %460 = vst [vmem:[#allocation5 + $0x60] sm:$0xff] %v435
    %461 = vst [vmem:[#allocation5 + $0x68] sm:$0xff] %v436
    %462 = vst [vmem:[#allocation5 + $0x70] sm:$0xff] %v437
    %463 = vst [vmem:[#allocation5 + $0x78] sm:$0xff] %v438
    %464 = vst [vmem:[#allocation5 + $0x80] sm:$0xff] %v439
    %465 = vst [vmem:[#allocation5 + $0x88] sm:$0xff] %v440
    %466 = vst [vmem:[#allocation5 + $0x90] sm:$0xff] %v441
    %467 = vst [vmem:[#allocation5 + $0x98] sm:$0xff] %v442
    %468 = vst [vmem:[#allocation5 + $0xa0] sm:$0xff] %v443
    %469 = vst [vmem:[#allocation5 + $0xa8] sm:$0xff] %v444
    %470 = vst [vmem:[#allocation5 + $0xb0] sm:$0xff] %v445
    %471 = vst [vmem:[#allocation5 + $0xb8] sm:$0xff] %v446
    %472 = vst [vmem:[#allocation5 + $0xc0] sm:$0xff] %v447
    // Predicated region
    $region10: #{tpu_custom_call.1} parent=1 // pred_check
      _
    $region11: #{tpu_custom_call.1} parent=1 // pred_check_branch
      %474 = sbr.rel (0) target = $region13
    $region12: #{tpu_custom_call.1} parent=1 // pred_region
      %s476 = ssub.s32 3200, 3200
      %477 = vsyncadd [#allocation4], %s476
      %s478 = sshll.u32 [#allocation5], 4
      %s479 = int_to_ptr.vmem [resolvable:$true] %s478
      %484 = dma.vmem_to_hbm [thread:$0]  %s479, 3200, %s1, [#allocation4], 128, 128, 8
    $region13: #{tpu_custom_call.1} parent=1 // pred_fallthru
      _
    // Predicated region
    $region14: #{tpu_custom_call.1} parent=1 // pred_check
      _
    $region15: #{tpu_custom_call.1} parent=1 // pred_check_branch
      %486 = sbr.rel (0) target = $region17
    $region16: #{tpu_custom_call.1} parent=1 // pred_region
      %487 = dma.done [#allocation4], 3200
    $region17: #{tpu_custom_call.1} parent=1 // pred_fallthru
      _
    %488 = vsyncpa [#allocation3], 1
    %489 = vsyncpa [#allocation4], 1

</llo_original>
